<compile_context>
chip_gen: v6e
topology: v6e:2x2x1
jax: 0.10.0
libtpu: 0.0.40
codegen_flags: <defaults>
</compile_context>

<pallas_src>
import functools

import jax
import jax.numpy as jnp
from jax.experimental import pallas as pl
from jax.experimental.pallas import tpu as pltpu


# ---------------------------------------------------------------------------
# Fused Pallas kernel (single full-array blocks; block_shape == array shape so
# the (8,128) divisibility rule is satisfied at these sizes).
# ---------------------------------------------------------------------------

def _vspec(shape):
    n = len(shape)
    return pl.BlockSpec(shape, lambda i, _n=n: (0,) * _n)


def _mbase_kernel(x_ref, w_enc_ref, b_enc_ref,
                  w_e1t_ref, w_e1b_ref, b_e1_ref, w_e2_ref, b_e2_ref,
                  w_self_ref, w_neigh_ref, b_gnn_ref,
                  w_heads_ref, b_heads_ref,
                  row_ref, cole_ref, col_ref, batch_ref,
                  gemb_ref, out_ref,
                  *, n_nodes, n_edges, n_graphs):
    f32 = jnp.float32

    def mm(a, b):
        # MXU matmul: bf16 inputs, f32 accumulation.
        return jnp.dot(a.astype(jnp.bfloat16), b.astype(jnp.bfloat16),
                       preferred_element_type=f32)

    # ---- extractor: node embeddings  ReLU(x @ W_enc + b) ---------------------
    node_emb = jnp.maximum(mm(x_ref[...], w_enc_ref[...]) + b_enc_ref[...], 0.0)

    # ---- one-hot gather / scatter matrices from int32 edge indices -----------
    # (built in-kernel; no (E,2H) edge_rep or dense adjacency is DMA'd)
    niota_en = jax.lax.broadcasted_iota(jnp.int32, (n_edges, n_nodes), 1)
    src_oh = (niota_en == row_ref[...]).astype(f32)    # (E,N): gather at edge src
    dst_oh = (niota_en == cole_ref[...]).astype(f32)   # (E,N): gather at edge dst
    niota_ne = jax.lax.broadcasted_iota(jnp.int32, (n_nodes, n_edges), 0)
    dst_sc = (niota_ne == col_ref[...]).astype(f32)    # (N,E): scatter-add to dst

    # ---- edge MLP on concat(node_emb[row], node_emb[col]) --------------------
    # concat([a,b]) @ W1 == a @ W1_top + b @ W1_bot  (W1 split in the wrapper)
    p_src = mm(node_emb, w_e1t_ref[...])               # (N,H)
    p_dst = mm(node_emb, w_e1b_ref[...])               # (N,H)
    h_edge = (jnp.dot(src_oh, p_src, preferred_element_type=f32)
              + jnp.dot(dst_oh, p_dst, preferred_element_type=f32)
              + b_e1_ref[...])
    h_edge = jnp.maximum(h_edge, 0.0)                  # (E,H)
    # Second "linear" (H -> 1) as a lane reduce; result stays in VMEM only.
    edge_att = jnp.sum(h_edge * w_e2_ref[...], axis=1, keepdims=True) + b_e2_ref[...]
    mask = jax.nn.sigmoid(edge_att)                    # (E,1)  PyG set_masks semantics

    # ---- backbone GNN layer: ReLU(x@Ws + scatter_dst(mask * gather_src(x@Wn)) + b)
    msg = mm(node_emb, w_neigh_ref[...])                                   # (N,H)
    gathered = jnp.dot(src_oh, msg, preferred_element_type=f32) * mask     # (E,H)
    agg = jnp.dot(dst_sc, gathered, preferred_element_type=f32)            # (N,H)
    h = jnp.maximum(mm(node_emb, w_self_ref[...]) + agg + b_gnn_ref[...], 0.0)

    # ---- mean pooling per graph ----------------------------------------------
    giota = jax.lax.broadcasted_iota(jnp.int32, (n_graphs, n_nodes), 0)
    gonehot = (giota == batch_ref[...]).astype(f32)    # (G,N)
    counts = jnp.maximum(jnp.sum(gonehot, axis=1, keepdims=True), 1.0)
    pool = gonehot / counts
    graph_emb = jnp.dot(pool, h, preferred_element_type=f32)               # (G,H)
    gemb_ref[...] = graph_emb.astype(gemb_ref.dtype)

    # ---- both prediction heads in one matmul (weights concatenated in wrapper)
    out = mm(graph_emb, w_heads_ref[...]) + b_heads_ref[...]               # (G,2*O)
    out_ref[...] = out.astype(out_ref.dtype)


def mbase_fused(x, w_enc, b_enc, w_e1_top, w_e1_bot, b_e1, w_e2_row, b_e2,
                w_self, w_neigh, b_gnn, w_heads, b_heads,
                row_e1, col_e1, col_1e, batch_1n, num_graphs):
    n_nodes = x.shape[0]
    hidden = w_enc.shape[1]
    n_edges = row_e1.shape[0]
    out2 = w_heads.shape[1]

    args = (x, w_enc, b_enc, w_e1_top, w_e1_bot, b_e1, w_e2_row, b_e2,
            w_self, w_neigh, b_gnn, w_heads, b_heads,
            row_e1, col_e1, col_1e, batch_1n)

    kernel = functools.partial(_mbase_kernel, n_nodes=n_nodes,
                               n_edges=n_edges, n_graphs=num_graphs)

    return pl.pallas_call(
        kernel,
        grid=(1,),
        in_specs=[_vspec(a.shape) for a in args],
        out_specs=[_vspec((num_graphs, hidden)), _vspec((num_graphs, out2))],
        out_shape=(jax.ShapeDtypeStruct((num_graphs, hidden), jnp.float32),
                   jax.ShapeDtypeStruct((num_graphs, out2), jnp.float32)),
        compiler_params=pltpu.CompilerParams(dimension_semantics=("arbitrary",)),
    )(*args)


# ---------------------------------------------------------------------------
# Parameters & forward (JAX glue is only tiny reshapes / concats of params)
# ---------------------------------------------------------------------------

def mbase_init_params(key, in_dim, hidden_dim, out_dim):
    ks = jax.random.split(key, 10)
    s = 0.1
    return {
        # extractor
        "w_enc": s * jax.random.normal(ks[0], (in_dim, hidden_dim), jnp.float32),
        "b_enc": jnp.zeros((1, hidden_dim), jnp.float32),
        # edge_mlp: Linear(2*hidden, hidden) -> ReLU -> Linear(hidden, 1)
        "w_e1": s * jax.random.normal(ks[1], (2 * hidden_dim, hidden_dim), jnp.float32),
        "b_e1": jnp.zeros((1, hidden_dim), jnp.float32),
        "w_e2": s * jax.random.normal(ks[2], (hidden_dim, 1), jnp.float32),
        "b_e2": jnp.zeros((1, 1), jnp.float32),
        # backbone GNN layer
        "w_self": s * jax.random.normal(ks[3], (hidden_dim, hidden_dim), jnp.float32),
        "w_neigh": s * jax.random.normal(ks[4], (hidden_dim, hidden_dim), jnp.float32),
        "b_gnn": jnp.zeros((1, hidden_dim), jnp.float32),
        # prediction heads
        "w_causal": s * jax.random.normal(ks[5], (hidden_dim, out_dim), jnp.float32),
        "b_causal": jnp.zeros((1, out_dim), jnp.float32),
        "w_conf": s * jax.random.normal(ks[6], (hidden_dim, out_dim), jnp.float32),
        "b_conf": jnp.zeros((1, out_dim), jnp.float32),
    }


def mbase_forward(params, x, edge_index, batch_vec, num_graphs, ratio=-1.0):
    # ratio < 0 path of get_splited_graph: both branches see the full graph with
    # sigmoid(edge_att) masks; relabel is the identity (every node has an edge).
    assert ratio < 0, "sparse_topk split (ratio >= 0) not implemented"

    n_nodes = x.shape[0]
    n_edges = edge_index.shape[1]
    hidden = params["w_enc"].shape[1]
    out_dim = params["w_causal"].shape[1]

    # Index arrays, each in the exact (sublane / lane) layout the kernel wants.
    row_e1 = edge_index[0].reshape(n_edges, 1).astype(jnp.int32)   # src, (E,1)
    col_e1 = edge_index[1].reshape(n_edges, 1).astype(jnp.int32)   # dst, (E,1)
    col_1e = edge_index[1].reshape(1, n_edges).astype(jnp.int32)   # dst, (1,E)
    batch_1n = batch_vec.reshape(1, n_nodes).astype(jnp.int32)

    # Split / concat weights so the kernel avoids concats and runs both heads at once.
    w_e1_top = params["w_e1"][:hidden]
    w_e1_bot = params["w_e1"][hidden:]
    w_e2_row = params["w_e2"].reshape(1, hidden)
    w_heads = jnp.concatenate([params["w_causal"], params["w_conf"]], axis=1)
    b_heads = jnp.concatenate([params["b_causal"], params["b_conf"]], axis=1)

    graph_emb, heads = mbase_fused(
        x, params["w_enc"], params["b_enc"],
        w_e1_top, w_e1_bot, params["b_e1"], w_e2_row, params["b_e2"],
        params["w_self"], params["w_neigh"], params["b_gnn"],
        w_heads, b_heads,
        row_e1, col_e1, col_1e, batch_1n, num_graphs)

    causal_out = heads[:, :out_dim]
    spu_out = heads[:, out_dim:]
    # On the ratio<0 path the causal and spurious graph embeddings are identical.
    return causal_out, spu_out, graph_emb, graph_emb


# ---------------------------------------------------------------------------
# Example run
# ---------------------------------------------------------------------------

if __name__ == "__main__":
    in_dim, hidden_dim, out_dim = 8, 32, 4
    num_graphs, nodes_per_graph = 2, 8
    num_nodes = num_graphs * nodes_per_graph

    key = jax.random.PRNGKey(0)
    k_x, k_p = jax.random.split(key)

    # node features
    x = jax.random.normal(k_x, (num_nodes, in_dim), jnp.float32)

    # bidirectional ring graph per component (every node appears in edge_index)
    rows, cols = [], []
    for g in range(num_graphs):
        base = g * nodes_per_graph
        for i in range(nodes_per_graph):
            src = base + i
            dst = base + (i + 1) % nodes_per_graph
            rows += [src, dst]
            cols += [dst, src]
    edge_index = jnp.array([rows, cols], dtype=jnp.int32)           # (2, E), E = 32
    batch_vec = jnp.repeat(jnp.arange(num_graphs, dtype=jnp.int32),
                           nodes_per_graph)                          # (N,)

    params = mbase_init_params(k_p, in_dim, hidden_dim, out_dim)

    fwd = jax.jit(mbase_forward, static_argnames=("num_graphs", "ratio"))
    causal_out, spu_out, causal_emb, spu_emb = fwd(
        params, x, edge_index, batch_vec, num_graphs=num_graphs, ratio=-1.0)

    jax.block_until_ready((causal_out, spu_out, causal_emb, spu_emb))
    assert causal_out.shape == (num_graphs, out_dim)
    assert spu_out.shape == (num_graphs, out_dim)
    assert causal_emb.shape == (num_graphs, hidden_dim)
    assert spu_emb.shape == (num_graphs, hidden_dim)
    print("KERNEL_OK")
</pallas_src>

<mosaic_0001>
module attributes {stable_mosaic.version = 11 : i64} {
  func.func @_mbase_kernel(%arg0: i32, %arg1: memref<16x8xf32, #tpu.memory_space<vmem>>, %arg2: memref<8x32xf32, #tpu.memory_space<vmem>>, %arg3: memref<1x32xf32, #tpu.memory_space<vmem>>, %arg4: memref<32x32xf32, #tpu.memory_space<vmem>>, %arg5: memref<32x32xf32, #tpu.memory_space<vmem>>, %arg6: memref<1x32xf32, #tpu.memory_space<vmem>>, %arg7: memref<1x32xf32, #tpu.memory_space<vmem>>, %arg8: memref<1x1xf32, #tpu.memory_space<vmem>>, %arg9: memref<32x32xf32, #tpu.memory_space<vmem>>, %arg10: memref<32x32xf32, #tpu.memory_space<vmem>>, %arg11: memref<1x32xf32, #tpu.memory_space<vmem>>, %arg12: memref<32x8xf32, #tpu.memory_space<vmem>>, %arg13: memref<1x8xf32, #tpu.memory_space<vmem>>, %arg14: memref<32x1xi32, #tpu.memory_space<vmem>>, %arg15: memref<32x1xi32, #tpu.memory_space<vmem>>, %arg16: memref<1x32xi32, #tpu.memory_space<vmem>>, %arg17: memref<1x16xi32, #tpu.memory_space<vmem>>, %arg18: memref<2x32xf32, #tpu.memory_space<vmem>>, %arg19: memref<2x8xf32, #tpu.memory_space<vmem>>) attributes {dimension_semantics = [#tpu.dimension_semantics<arbitrary>], iteration_bounds = array<i64: 1>, scalar_prefetch = 0 : i64, scratch_operands = 0 : i64, tpu.core_type = #tpu.core_type<tc>, window_params = [{pipeline_mode = #tpu.pipeline_mode<synchronous>, transform_indices = @transform_0, window_bounds = array<i64: 16, 8>}, {pipeline_mode = #tpu.pipeline_mode<synchronous>, transform_indices = @transform_1, window_bounds = array<i64: 8, 32>}, {pipeline_mode = #tpu.pipeline_mode<synchronous>, transform_indices = @transform_2, window_bounds = array<i64: 1, 32>}, {pipeline_mode = #tpu.pipeline_mode<synchronous>, transform_indices = @transform_3, window_bounds = array<i64: 32, 32>}, {pipeline_mode = #tpu.pipeline_mode<synchronous>, transform_indices = @transform_4, window_bounds = array<i64: 32, 32>}, {pipeline_mode = #tpu.pipeline_mode<synchronous>, transform_indices = @transform_5, window_bounds = array<i64: 1, 32>}, {pipeline_mode = #tpu.pipeline_mode<synchronous>, transform_indices = @transform_6, window_bounds = array<i64: 1, 32>}, {pipeline_mode = #tpu.pipeline_mode<synchronous>, transform_indices = @transform_7, window_bounds = array<i64: 1, 1>}, {pipeline_mode = #tpu.pipeline_mode<synchronous>, transform_indices = @transform_8, window_bounds = array<i64: 32, 32>}, {pipeline_mode = #tpu.pipeline_mode<synchronous>, transform_indices = @transform_9, window_bounds = array<i64: 32, 32>}, {pipeline_mode = #tpu.pipeline_mode<synchronous>, transform_indices = @transform_10, window_bounds = array<i64: 1, 32>}, {pipeline_mode = #tpu.pipeline_mode<synchronous>, transform_indices = @transform_11, window_bounds = array<i64: 32, 8>}, {pipeline_mode = #tpu.pipeline_mode<synchronous>, transform_indices = @transform_12, window_bounds = array<i64: 1, 8>}, {pipeline_mode = #tpu.pipeline_mode<synchronous>, transform_indices = @transform_13, window_bounds = array<i64: 32, 1>}, {pipeline_mode = #tpu.pipeline_mode<synchronous>, transform_indices = @transform_14, window_bounds = array<i64: 32, 1>}, {pipeline_mode = #tpu.pipeline_mode<synchronous>, transform_indices = @transform_15, window_bounds = array<i64: 1, 32>}, {pipeline_mode = #tpu.pipeline_mode<synchronous>, transform_indices = @transform_16, window_bounds = array<i64: 1, 16>}, {pipeline_mode = #tpu.pipeline_mode<synchronous>, transform_indices = @transform_17, window_bounds = array<i64: 2, 32>}, {pipeline_mode = #tpu.pipeline_mode<synchronous>, transform_indices = @transform_18, window_bounds = array<i64: 2, 8>}]} {
    %c0 = arith.constant 0 : index
    %c0_0 = arith.constant 0 : index
    %0 = vector.load %arg1[%c0, %c0_0] : memref<16x8xf32, #tpu.memory_space<vmem>>, vector<16x8xf32>
    %c0_1 = arith.constant 0 : index
    %c0_2 = arith.constant 0 : index
    %1 = vector.load %arg2[%c0_1, %c0_2] : memref<8x32xf32, #tpu.memory_space<vmem>>, vector<8x32xf32>
    %2 = arith.truncf %0 : vector<16x8xf32> to vector<16x8xbf16>
    %3 = arith.truncf %1 : vector<8x32xf32> to vector<8x32xbf16>
    %cst = arith.constant dense<0.000000e+00> : vector<16x32xf32>
    %4 = tpu.matmul %2, %3, %cst {dimension_numbers = #tpu.dot_dimension_numbers<[1], [0], [0], [1], [0, 0, 1, 1], [], []>} : vector<16x8xbf16>, vector<8x32xbf16>, vector<16x32xf32> -> vector<16x32xf32>
    %c0_3 = arith.constant 0 : index
    %c0_4 = arith.constant 0 : index
    %5 = vector.load %arg3[%c0_3, %c0_4] : memref<1x32xf32, #tpu.memory_space<vmem>>, vector<1x32xf32>
    %6 = vector.broadcast %5 : vector<1x32xf32> to vector<16x32xf32>
    %7 = arith.addf %4, %6 : vector<16x32xf32>
    %cst_5 = arith.constant 0.000000e+00 : f32
    %8 = vector.broadcast %cst_5 : f32 to vector<16x32xf32>
    %9 = arith.maximumf %7, %8 : vector<16x32xf32>
    %10 = tpu.iota {dimensions = array<i32: 1>} : vector<32x16xi32>
    %c0_6 = arith.constant 0 : index
    %c0_7 = arith.constant 0 : index
    %11 = vector.load %arg14[%c0_6, %c0_7] : memref<32x1xi32, #tpu.memory_space<vmem>>, vector<32x1xi32>
    %12 = vector.broadcast %11 : vector<32x1xi32> to vector<32x16xi32>
    %13 = arith.cmpi eq, %10, %12 : vector<32x16xi32>
    %14 = arith.extui %13 : vector<32x16xi1> to vector<32x16xi32>
    %15 = arith.sitofp %14 : vector<32x16xi32> to vector<32x16xf32>
    %c0_8 = arith.constant 0 : index
    %c0_9 = arith.constant 0 : index
    %16 = vector.load %arg15[%c0_8, %c0_9] : memref<32x1xi32, #tpu.memory_space<vmem>>, vector<32x1xi32>
    %17 = vector.broadcast %16 : vector<32x1xi32> to vector<32x16xi32>
    %18 = arith.cmpi eq, %10, %17 : vector<32x16xi32>
    %19 = arith.extui %18 : vector<32x16xi1> to vector<32x16xi32>
    %20 = arith.sitofp %19 : vector<32x16xi32> to vector<32x16xf32>
    %21 = tpu.iota {dimensions = array<i32: 0>} : vector<16x32xi32>
    %c0_10 = arith.constant 0 : index
    %c0_11 = arith.constant 0 : index
    %22 = vector.load %arg16[%c0_10, %c0_11] : memref<1x32xi32, #tpu.memory_space<vmem>>, vector<1x32xi32>
    %23 = vector.broadcast %22 : vector<1x32xi32> to vector<16x32xi32>
    %24 = arith.cmpi eq, %21, %23 : vector<16x32xi32>
    %25 = arith.extui %24 : vector<16x32xi1> to vector<16x32xi32>
    %26 = arith.sitofp %25 : vector<16x32xi32> to vector<16x32xf32>
    %c0_12 = arith.constant 0 : index
    %c0_13 = arith.constant 0 : index
    %27 = vector.load %arg4[%c0_12, %c0_13] : memref<32x32xf32, #tpu.memory_space<vmem>>, vector<32x32xf32>
    %28 = arith.truncf %9 : vector<16x32xf32> to vector<16x32xbf16>
    %29 = arith.truncf %27 : vector<32x32xf32> to vector<32x32xbf16>
    %cst_14 = arith.constant dense<0.000000e+00> : vector<16x32xf32>
    %30 = tpu.matmul %28, %29, %cst_14 {dimension_numbers = #tpu.dot_dimension_numbers<[1], [0], [0], [1], [0, 0, 1, 1], [], []>} : vector<16x32xbf16>, vector<32x32xbf16>, vector<16x32xf32> -> vector<16x32xf32>
    %c0_15 = arith.constant 0 : index
    %c0_16 = arith.constant 0 : index
    %31 = vector.load %arg5[%c0_15, %c0_16] : memref<32x32xf32, #tpu.memory_space<vmem>>, vector<32x32xf32>
    %32 = arith.truncf %9 : vector<16x32xf32> to vector<16x32xbf16>
    %33 = arith.truncf %31 : vector<32x32xf32> to vector<32x32xbf16>
    %cst_17 = arith.constant dense<0.000000e+00> : vector<16x32xf32>
    %34 = tpu.matmul %32, %33, %cst_17 {dimension_numbers = #tpu.dot_dimension_numbers<[1], [0], [0], [1], [0, 0, 1, 1], [], []>} : vector<16x32xbf16>, vector<32x32xbf16>, vector<16x32xf32> -> vector<16x32xf32>
    %cst_18 = arith.constant dense<0.000000e+00> : vector<32x32xf32>
    %35 = tpu.matmul %15, %30, %cst_18 {dimension_numbers = #tpu.dot_dimension_numbers<[1], [0], [0], [1], [0, 0, 1, 1], [], []>} : vector<32x16xf32>, vector<16x32xf32>, vector<32x32xf32> -> vector<32x32xf32>
    %cst_19 = arith.constant dense<0.000000e+00> : vector<32x32xf32>
    %36 = tpu.matmul %20, %34, %cst_19 {dimension_numbers = #tpu.dot_dimension_numbers<[1], [0], [0], [1], [0, 0, 1, 1], [], []>} : vector<32x16xf32>, vector<16x32xf32>, vector<32x32xf32> -> vector<32x32xf32>
    %37 = arith.addf %35, %36 : vector<32x32xf32>
    %c0_20 = arith.constant 0 : index
    %c0_21 = arith.constant 0 : index
    %38 = vector.load %arg6[%c0_20, %c0_21] : memref<1x32xf32, #tpu.memory_space<vmem>>, vector<1x32xf32>
    %39 = vector.broadcast %38 : vector<1x32xf32> to vector<32x32xf32>
    %40 = arith.addf %37, %39 : vector<32x32xf32>
    %cst_22 = arith.constant 0.000000e+00 : f32
    %41 = vector.broadcast %cst_22 : f32 to vector<32x32xf32>
    %42 = arith.maximumf %40, %41 : vector<32x32xf32>
    %c0_23 = arith.constant 0 : index
    %c0_24 = arith.constant 0 : index
    %43 = vector.load %arg7[%c0_23, %c0_24] : memref<1x32xf32, #tpu.memory_space<vmem>>, vector<1x32xf32>
    %44 = vector.broadcast %43 : vector<1x32xf32> to vector<32x32xf32>
    %45 = arith.mulf %42, %44 : vector<32x32xf32>
    %cst_25 = arith.constant dense<0.000000e+00> : vector<32xf32>
    %46 = vector.multi_reduction <add>, %45, %cst_25 [1] : vector<32x32xf32> to vector<32xf32>
    %47 = vector.shape_cast %46 : vector<32xf32> to vector<32x1xf32>
    %c0_26 = arith.constant 0 : index
    %c0_27 = arith.constant 0 : index
    %48 = vector.load %arg8[%c0_26, %c0_27] : memref<1x1xf32, #tpu.memory_space<vmem>>, vector<1x1xf32>
    %49 = vector.broadcast %48 : vector<1x1xf32> to vector<32x1xf32>
    %50 = arith.addf %47, %49 : vector<32x1xf32>
    %51 = arith.negf %50 : vector<32x1xf32>
    %52 = math.exp %51 : vector<32x1xf32>
    %cst_28 = arith.constant 1.000000e+00 : f32
    %53 = vector.broadcast %cst_28 : f32 to vector<32x1xf32>
    %54 = arith.addf %53, %52 : vector<32x1xf32>
    %55 = arith.divf %53, %54 : vector<32x1xf32>
    %c0_29 = arith.constant 0 : index
    %c0_30 = arith.constant 0 : index
    %56 = vector.load %arg10[%c0_29, %c0_30] : memref<32x32xf32, #tpu.memory_space<vmem>>, vector<32x32xf32>
    %57 = arith.truncf %9 : vector<16x32xf32> to vector<16x32xbf16>
    %58 = arith.truncf %56 : vector<32x32xf32> to vector<32x32xbf16>
    %cst_31 = arith.constant dense<0.000000e+00> : vector<16x32xf32>
    %59 = tpu.matmul %57, %58, %cst_31 {dimension_numbers = #tpu.dot_dimension_numbers<[1], [0], [0], [1], [0, 0, 1, 1], [], []>} : vector<16x32xbf16>, vector<32x32xbf16>, vector<16x32xf32> -> vector<16x32xf32>
    %cst_32 = arith.constant dense<0.000000e+00> : vector<32x32xf32>
    %60 = tpu.matmul %15, %59, %cst_32 {dimension_numbers = #tpu.dot_dimension_numbers<[1], [0], [0], [1], [0, 0, 1, 1], [], []>} : vector<32x16xf32>, vector<16x32xf32>, vector<32x32xf32> -> vector<32x32xf32>
    %61 = vector.broadcast %55 : vector<32x1xf32> to vector<32x32xf32>
    %62 = arith.mulf %60, %61 : vector<32x32xf32>
    %cst_33 = arith.constant dense<0.000000e+00> : vector<16x32xf32>
    %63 = tpu.matmul %26, %62, %cst_33 {dimension_numbers = #tpu.dot_dimension_numbers<[1], [0], [0], [1], [0, 0, 1, 1], [], []>} : vector<16x32xf32>, vector<32x32xf32>, vector<16x32xf32> -> vector<16x32xf32>
    %c0_34 = arith.constant 0 : index
    %c0_35 = arith.constant 0 : index
    %64 = vector.load %arg9[%c0_34, %c0_35] : memref<32x32xf32, #tpu.memory_space<vmem>>, vector<32x32xf32>
    %65 = arith.truncf %9 : vector<16x32xf32> to vector<16x32xbf16>
    %66 = arith.truncf %64 : vector<32x32xf32> to vector<32x32xbf16>
    %cst_36 = arith.constant dense<0.000000e+00> : vector<16x32xf32>
    %67 = tpu.matmul %65, %66, %cst_36 {dimension_numbers = #tpu.dot_dimension_numbers<[1], [0], [0], [1], [0, 0, 1, 1], [], []>} : vector<16x32xbf16>, vector<32x32xbf16>, vector<16x32xf32> -> vector<16x32xf32>
    %68 = arith.addf %67, %63 : vector<16x32xf32>
    %c0_37 = arith.constant 0 : index
    %c0_38 = arith.constant 0 : index
    %69 = vector.load %arg11[%c0_37, %c0_38] : memref<1x32xf32, #tpu.memory_space<vmem>>, vector<1x32xf32>
    %70 = vector.broadcast %69 : vector<1x32xf32> to vector<16x32xf32>
    %71 = arith.addf %68, %70 : vector<16x32xf32>
    %cst_39 = arith.constant 0.000000e+00 : f32
    %72 = vector.broadcast %cst_39 : f32 to vector<16x32xf32>
    %73 = arith.maximumf %71, %72 : vector<16x32xf32>
    %74 = tpu.iota {dimensions = array<i32: 0>} : vector<2x16xi32>
    %c0_40 = arith.constant 0 : index
    %c0_41 = arith.constant 0 : index
    %75 = vector.load %arg17[%c0_40, %c0_41] : memref<1x16xi32, #tpu.memory_space<vmem>>, vector<1x16xi32>
    %76 = vector.broadcast %75 : vector<1x16xi32> to vector<2x16xi32>
    %77 = arith.cmpi eq, %74, %76 : vector<2x16xi32>
    %78 = arith.extui %77 : vector<2x16xi1> to vector<2x16xi32>
    %79 = arith.sitofp %78 : vector<2x16xi32> to vector<2x16xf32>
    %cst_42 = arith.constant dense<0.000000e+00> : vector<2xf32>
    %80 = vector.multi_reduction <add>, %79, %cst_42 [1] : vector<2x16xf32> to vector<2xf32>
    %81 = vector.shape_cast %80 : vector<2xf32> to vector<2x1xf32>
    %cst_43 = arith.constant 1.000000e+00 : f32
    %82 = vector.broadcast %cst_43 : f32 to vector<2x1xf32>
    %83 = arith.maximumf %81, %82 : vector<2x1xf32>
    %84 = vector.broadcast %83 : vector<2x1xf32> to vector<2x16xf32>
    %85 = arith.divf %79, %84 : vector<2x16xf32>
    %cst_44 = arith.constant dense<0.000000e+00> : vector<2x32xf32>
    %86 = tpu.matmul %85, %73, %cst_44 {dimension_numbers = #tpu.dot_dimension_numbers<[1], [0], [0], [1], [0, 0, 1, 1], [], []>} : vector<2x16xf32>, vector<16x32xf32>, vector<2x32xf32> -> vector<2x32xf32>
    %c0_45 = arith.constant 0 : index
    %c0_46 = arith.constant 0 : index
    %87 = vector.load %arg18[%c0_45, %c0_46] : memref<2x32xf32, #tpu.memory_space<vmem>>, vector<2x32xf32>
    tpu.vector_store %arg18[%c0_45, %c0_46], %86 {strides = array<i32>} : memref<2x32xf32, #tpu.memory_space<vmem>>, vector<2x32xf32>,
    %c0_47 = arith.constant 0 : index
    %c0_48 = arith.constant 0 : index
    %88 = vector.load %arg12[%c0_47, %c0_48] : memref<32x8xf32, #tpu.memory_space<vmem>>, vector<32x8xf32>
    %89 = arith.truncf %86 : vector<2x32xf32> to vector<2x32xbf16>
    %90 = arith.truncf %88 : vector<32x8xf32> to vector<32x8xbf16>
    %cst_49 = arith.constant dense<0.000000e+00> : vector<2x8xf32>
    %91 = tpu.matmul %89, %90, %cst_49 {dimension_numbers = #tpu.dot_dimension_numbers<[1], [0], [0], [1], [0, 0, 1, 1], [], []>} : vector<2x32xbf16>, vector<32x8xbf16>, vector<2x8xf32> -> vector<2x8xf32>
    %c0_50 = arith.constant 0 : index
    %c0_51 = arith.constant 0 : index
    %92 = vector.load %arg13[%c0_50, %c0_51] : memref<1x8xf32, #tpu.memory_space<vmem>>, vector<1x8xf32>
    %93 = vector.broadcast %92 : vector<1x8xf32> to vector<2x8xf32>
    %94 = arith.addf %91, %93 : vector<2x8xf32>
    %c0_52 = arith.constant 0 : index
    %c0_53 = arith.constant 0 : index
    %95 = vector.load %arg19[%c0_52, %c0_53] : memref<2x8xf32, #tpu.memory_space<vmem>>, vector<2x8xf32>
    tpu.vector_store %arg19[%c0_52, %c0_53], %94 {strides = array<i32>} : memref<2x8xf32, #tpu.memory_space<vmem>>, vector<2x8xf32>,
    return
  }
  func.func @transform_0(%arg0: i32) -> (i32, i32) {
    %c0_i32 = arith.constant 0 : i32
    %c0_i32_0 = arith.constant 0 : i32
    %c0_i32_1 = arith.constant 0 : i32
    return %c0_i32, %c0_i32_0 : i32, i32
  }
  func.func @transform_1(%arg0: i32) -> (i32, i32) {
    %c0_i32 = arith.constant 0 : i32
    %c0_i32_0 = arith.constant 0 : i32
    %c0_i32_1 = arith.constant 0 : i32
    return %c0_i32, %c0_i32_0 : i32, i32
  }
  func.func @transform_2(%arg0: i32) -> (i32, i32) {
    %c0_i32 = arith.constant 0 : i32
    %c0_i32_0 = arith.constant 0 : i32
    %c0_i32_1 = arith.constant 0 : i32
    return %c0_i32, %c0_i32_0 : i32, i32
  }
  func.func @transform_3(%arg0: i32) -> (i32, i32) {
    %c0_i32 = arith.constant 0 : i32
    %c0_i32_0 = arith.constant 0 : i32
    %c0_i32_1 = arith.constant 0 : i32
    return %c0_i32, %c0_i32_0 : i32, i32
  }
  func.func @transform_4(%arg0: i32) -> (i32, i32) {
    %c0_i32 = arith.constant 0 : i32
    %c0_i32_0 = arith.constant 0 : i32
    %c0_i32_1 = arith.constant 0 : i32
    return %c0_i32, %c0_i32_0 : i32, i32
  }
  func.func @transform_5(%arg0: i32) -> (i32, i32) {
    %c0_i32 = arith.constant 0 : i32
    %c0_i32_0 = arith.constant 0 : i32
    %c0_i32_1 = arith.constant 0 : i32
    return %c0_i32, %c0_i32_0 : i32, i32
  }
  func.func @transform_6(%arg0: i32) -> (i32, i32) {
    %c0_i32 = arith.constant 0 : i32
    %c0_i32_0 = arith.constant 0 : i32
    %c0_i32_1 = arith.constant 0 : i32
    return %c0_i32, %c0_i32_0 : i32, i32
  }
  func.func @transform_7(%arg0: i32) -> (i32, i32) {
    %c0_i32 = arith.constant 0 : i32
    %c0_i32_0 = arith.constant 0 : i32
    %c0_i32_1 = arith.constant 0 : i32
    return %c0_i32, %c0_i32_0 : i32, i32
  }
  func.func @transform_8(%arg0: i32) -> (i32, i32) {
    %c0_i32 = arith.constant 0 : i32
    %c0_i32_0 = arith.constant 0 : i32
    %c0_i32_1 = arith.constant 0 : i32
    return %c0_i32, %c0_i32_0 : i32, i32
  }
  func.func @transform_9(%arg0: i32) -> (i32, i32) {
    %c0_i32 = arith.constant 0 : i32
    %c0_i32_0 = arith.constant 0 : i32
    %c0_i32_1 = arith.constant 0 : i32
    return %c0_i32, %c0_i32_0 : i32, i32
  }
  func.func @transform_10(%arg0: i32) -> (i32, i32) {
    %c0_i32 = arith.constant 0 : i32
    %c0_i32_0 = arith.constant 0 : i32
    %c0_i32_1 = arith.constant 0 : i32
    return %c0_i32, %c0_i32_0 : i32, i32
  }
  func.func @transform_11(%arg0: i32) -> (i32, i32) {
    %c0_i32 = arith.constant 0 : i32
    %c0_i32_0 = arith.constant 0 : i32
    %c0_i32_1 = arith.constant 0 : i32
    return %c0_i32, %c0_i32_0 : i32, i32
  }
  func.func @transform_12(%arg0: i32) -> (i32, i32) {
    %c0_i32 = arith.constant 0 : i32
    %c0_i32_0 = arith.constant 0 : i32
    %c0_i32_1 = arith.constant 0 : i32
    return %c0_i32, %c0_i32_0 : i32, i32
  }
  func.func @transform_13(%arg0: i32) -> (i32, i32) {
    %c0_i32 = arith.constant 0 : i32
    %c0_i32_0 = arith.constant 0 : i32
    %c0_i32_1 = arith.constant 0 : i32
    return %c0_i32, %c0_i32_0 : i32, i32
  }
  func.func @transform_14(%arg0: i32) -> (i32, i32) {
    %c0_i32 = arith.constant 0 : i32
    %c0_i32_0 = arith.constant 0 : i32
    %c0_i32_1 = arith.constant 0 : i32
    return %c0_i32, %c0_i32_0 : i32, i32
  }
  func.func @transform_15(%arg0: i32) -> (i32, i32) {
    %c0_i32 = arith.constant 0 : i32
    %c0_i32_0 = arith.constant 0 : i32
    %c0_i32_1 = arith.constant 0 : i32
    return %c0_i32, %c0_i32_0 : i32, i32
  }
  func.func @transform_16(%arg0: i32) -> (i32, i32) {
    %c0_i32 = arith.constant 0 : i32
    %c0_i32_0 = arith.constant 0 : i32
    %c0_i32_1 = arith.constant 0 : i32
    return %c0_i32, %c0_i32_0 : i32, i32
  }
  func.func @transform_17(%arg0: i32) -> (i32, i32) {
    %c0_i32 = arith.constant 0 : i32
    %c0_i32_0 = arith.constant 0 : i32
    %c0_i32_1 = arith.constant 0 : i32
    return %c0_i32, %c0_i32_0 : i32, i32
  }
  func.func @transform_18(%arg0: i32) -> (i32, i32) {
    %c0_i32 = arith.constant 0 : i32
    %c0_i32_0 = arith.constant 0 : i32
    %c0_i32_1 = arith.constant 0 : i32
    return %c0_i32, %c0_i32_0 : i32, i32
  }
}

</mosaic_0001>

<llo_original>
// kernel: mbase_forward.1
$region0: #{mbase_forward.1}
  #allocation0 [shape = 'u32[]', space=smem, size = 0x4, offset = 0x4, fixed_abs, tag = 'smem constant byte address 0x4 - core index']
  #allocation1 [shape = 'u32[144,128]{1,0:T(1,128)}', space=vmem, size = 0x12000, scoped, tag = 'internal scratch']
  #allocation2 [shape = 'f32[1,1]{1,0:T(1,128)S(1)}', space=vmem, size = 0x200, scoped, tag = 'scoped memory for mbase_forward.1']
  %s0 = inlined_call_operand.vmem [shape: f32[16,8], index: 0, kind: input, shape index: {}]
  %s1 = inlined_call_operand.vmem [shape: f32[8,32], index: 1, kind: input, shape index: {}]
  %s2 = inlined_call_operand.vmem [shape: f32[1,32], index: 2, kind: input, shape index: {}]
  %s3 = inlined_call_operand.vmem [shape: f32[32,32], index: 3, kind: input, shape index: {}]
  %s4 = inlined_call_operand.vmem [shape: f32[32,32], index: 4, kind: input, shape index: {}]
  %s5 = inlined_call_operand.vmem [shape: f32[1,32], index: 5, kind: input, shape index: {}]
  %s6 = inlined_call_operand.vmem [shape: f32[1,32], index: 6, kind: input, shape index: {}]
  %s7 = inlined_call_operand.<no memory space> [shape: f32[1,1], index: 7, kind: input, shape index: {}]
  %s8 = inlined_call_operand.vmem [shape: f32[32,32], index: 8, kind: input, shape index: {}]
  %s9 = inlined_call_operand.vmem [shape: f32[32,32], index: 9, kind: input, shape index: {}]
  %s10 = inlined_call_operand.vmem [shape: f32[1,32], index: 10, kind: input, shape index: {}]
  %s11 = inlined_call_operand.vmem [shape: f32[32,8], index: 11, kind: input, shape index: {}]
  %s12 = inlined_call_operand.vmem [shape: f32[1,8], index: 12, kind: input, shape index: {}]
  %s13 = inlined_call_operand.vmem [shape: s32[32,1], index: 13, kind: input, shape index: {}]
  %s14 = inlined_call_operand.vmem [shape: s32[32,1], index: 14, kind: input, shape index: {}]
  %s15 = inlined_call_operand.vmem [shape: s32[1,32], index: 15, kind: input, shape index: {}]
  %s16 = inlined_call_operand.vmem [shape: s32[1,16], index: 16, kind: input, shape index: {}]
  %s17 = inlined_call_operand.vmem [shape: f32[2,32], index: 17, kind: output, shape index: {0}]
  %s18 = inlined_call_operand.vmem [shape: f32[2,8], index: 18, kind: output, shape index: {1}]
  %19 = xla_tuple %s17, %s18
  %s20 = sld [smem:[#allocation0]]
  $region86: #{mbase_forward.1} parent=0
    _
  %s22 = ssub.s32 1, %s20
  %s23 = scalar_select 0, %s22, %s20
  %v24 = vstv %s7
  %25 = vst [vmem:[#allocation2] sm:$0x1] %v24
  // Predicated region
  $region2: #{mbase_forward.1} parent=0 // pred_check
    _
  $region3: #{mbase_forward.1} parent=0 // pred_check_branch
    %27 = sbr.rel (0) target = $region5
  $region4: #{mbase_forward.1} parent=0 // pred_region
    _
  $region5: #{mbase_forward.1} parent=0 // pred_fallthru
    _
  // Predicated region
  $region6: #{mbase_forward.1} parent=0 // pred_check
    _
  $region7: #{mbase_forward.1} parent=0 // pred_check_branch
    %29 = sbr.rel (0) target = $region9
  $region8: #{mbase_forward.1} parent=0 // pred_region
    _
  $region9: #{mbase_forward.1} parent=0 // pred_fallthru
    _
  // Predicated region
  $region10: #{mbase_forward.1} parent=0 // pred_check
    _
  $region11: #{mbase_forward.1} parent=0 // pred_check_branch
    %31 = sbr.rel (0) target = $region13
  $region12: #{mbase_forward.1} parent=0 // pred_region
    _
  $region13: #{mbase_forward.1} parent=0 // pred_fallthru
    _
  // Predicated region
  $region14: #{mbase_forward.1} parent=0 // pred_check
    _
  $region15: #{mbase_forward.1} parent=0 // pred_check_branch
    %33 = sbr.rel (0) target = $region17
  $region16: #{mbase_forward.1} parent=0 // pred_region
    _
  $region17: #{mbase_forward.1} parent=0 // pred_fallthru
    _
  // Predicated region
  $region18: #{mbase_forward.1} parent=0 // pred_check
    _
  $region19: #{mbase_forward.1} parent=0 // pred_check_branch
    %35 = sbr.rel (0) target = $region21
  $region20: #{mbase_forward.1} parent=0 // pred_region
    _
  $region21: #{mbase_forward.1} parent=0 // pred_fallthru
    _
  // Predicated region
  $region22: #{mbase_forward.1} parent=0 // pred_check
    _
  $region23: #{mbase_forward.1} parent=0 // pred_check_branch
    %37 = sbr.rel (0) target = $region25
  $region24: #{mbase_forward.1} parent=0 // pred_region
    _
  $region25: #{mbase_forward.1} parent=0 // pred_fallthru
    _
  // Predicated region
  $region26: #{mbase_forward.1} parent=0 // pred_check
    _
  $region27: #{mbase_forward.1} parent=0 // pred_check_branch
    %39 = sbr.rel (0) target = $region29
  $region28: #{mbase_forward.1} parent=0 // pred_region
    _
  $region29: #{mbase_forward.1} parent=0 // pred_fallthru
    _
  // Predicated region
  $region30: #{mbase_forward.1} parent=0 // pred_check
    _
  $region31: #{mbase_forward.1} parent=0 // pred_check_branch
    %41 = sbr.rel (0) target = $region33
  $region32: #{mbase_forward.1} parent=0 // pred_region
    _
  $region33: #{mbase_forward.1} parent=0 // pred_fallthru
    _
  // Predicated region
  $region34: #{mbase_forward.1} parent=0 // pred_check
    _
  $region35: #{mbase_forward.1} parent=0 // pred_check_branch
    %43 = sbr.rel (0) target = $region37
  $region36: #{mbase_forward.1} parent=0 // pred_region
    _
  $region37: #{mbase_forward.1} parent=0 // pred_fallthru
    _
  // Predicated region
  $region38: #{mbase_forward.1} parent=0 // pred_check
    _
  $region39: #{mbase_forward.1} parent=0 // pred_check_branch
    %45 = sbr.rel (0) target = $region41
  $region40: #{mbase_forward.1} parent=0 // pred_region
    _
  $region41: #{mbase_forward.1} parent=0 // pred_fallthru
    _
  // Predicated region
  $region42: #{mbase_forward.1} parent=0 // pred_check
    _
  $region43: #{mbase_forward.1} parent=0 // pred_check_branch
    %47 = sbr.rel (0) target = $region45
  $region44: #{mbase_forward.1} parent=0 // pred_region
    _
  $region45: #{mbase_forward.1} parent=0 // pred_fallthru
    _
  // Predicated region
  $region46: #{mbase_forward.1} parent=0 // pred_check
    _
  $region47: #{mbase_forward.1} parent=0 // pred_check_branch
    %49 = sbr.rel (0) target = $region49
  $region48: #{mbase_forward.1} parent=0 // pred_region
    _
  $region49: #{mbase_forward.1} parent=0 // pred_fallthru
    _
  // Predicated region
  $region50: #{mbase_forward.1} parent=0 // pred_check
    _
  $region51: #{mbase_forward.1} parent=0 // pred_check_branch
    %51 = sbr.rel (0) target = $region53
  $region52: #{mbase_forward.1} parent=0 // pred_region
    _
  $region53: #{mbase_forward.1} parent=0 // pred_fallthru
    _
  // Predicated region
  $region54: #{mbase_forward.1} parent=0 // pred_check
    _
  $region55: #{mbase_forward.1} parent=0 // pred_check_branch
    %53 = sbr.rel (0) target = $region57
  $region56: #{mbase_forward.1} parent=0 // pred_region
    _
  $region57: #{mbase_forward.1} parent=0 // pred_fallthru
    _
  // Predicated region
  $region58: #{mbase_forward.1} parent=0 // pred_check
    _
  $region59: #{mbase_forward.1} parent=0 // pred_check_branch
    %55 = sbr.rel (0) target = $region61
  $region60: #{mbase_forward.1} parent=0 // pred_region
    _
  $region61: #{mbase_forward.1} parent=0 // pred_fallthru
    _
  // Predicated region
  $region62: #{mbase_forward.1} parent=0 // pred_check
    _
  $region63: #{mbase_forward.1} parent=0 // pred_check_branch
    %57 = sbr.rel (0) target = $region65
  $region64: #{mbase_forward.1} parent=0 // pred_region
    _
  $region65: #{mbase_forward.1} parent=0 // pred_fallthru
    _
  // Predicated region
  $region66: #{mbase_forward.1} parent=0 // pred_check
    _
  $region67: #{mbase_forward.1} parent=0 // pred_check_branch
    %59 = sbr.rel (0) target = $region69
  $region68: #{mbase_forward.1} parent=0 // pred_region
    _
  $region69: #{mbase_forward.1} parent=0 // pred_fallthru
    _
  %v61 = vld [vmem:[%s0] sm:$0xff]
  %v62 = vld [vmem:[%s0 + $0x8] sm:$0xff]
  %v63 = vld [vmem:[%s1] sm:$0xff]
  %v64 = vpack.c.bf16 %v62, %v61
  %v65 = vpack.c.bf16 %v63, %v63
  %v66 = vld [vmem:[%s2] sm:$0x1]
  %v68 = vlaneseq
  %v69 = vshrl.u32 %v68, 7
  %v70 = vsub.s32 0, %v69
  %v71 = vrot.slane %v66, %v70
  %vm73 = vcmask 64512
  %v75 = vsel %vm73, %v64, 0
  %vm77 = vcmask 1043456
  %v79 = vsel %vm77, %v65, 0
  %81 = vmatprep.subr.bf16.mxu0 0
  %82 = vmatpush1.bf16.msra.mxu0 0
  %83 = vmatprep.subr.bf16.mxu0 0
  %84 = vmatpush1.bf16.msra.mxu0 0
  %85 = vmatprep.subr.bf16.mxu0 0
  %86 = vmatpush1.bf16.msra.mxu0 0
  %87 = vmatprep.subr.bf16.mxu0 0
  %88 = vmatpush1.bf16.msra.mxu0 0
  %89 = vmatprep.subr.bf16.mxu0 0
  %90 = vmatpush1.bf16.msra.mxu0 0
  %91 = vmatprep.subr.bf16.mxu0 0
  %92 = vmatpush1.bf16.msra.mxu0 0
  %93 = vmatprep.subr.bf16.mxu0 0
  %94 = vmatpush1.bf16.msra.mxu0 0
  %95 = vmatprep.subr.bf16.mxu0 0
  %96 = vmatpush1.bf16.msra.mxu0 %v79
  %97 = vmatprep.subr.bf16.mxu0 0
  %98 = vmatpush2.bf16.msra.mxu0 0
  %99 = vmatprep.subr.bf16.mxu0 0
  %100 = vmatpush2.bf16.msra.mxu0 0
  %101 = vmatprep.subr.bf16.mxu0 0
  %102 = vmatpush2.bf16.msra.mxu0 0
  %103 = vmatprep.subr.bf16.mxu0 0
  %104 = vmatpush2.bf16.msra.mxu0 0
  %105 = vmatprep.subr.bf16.mxu0 0
  %106 = vmatpush2.bf16.msra.mxu0 0
  %107 = vmatprep.subr.bf16.mxu0 0
  %108 = vmatpush2.bf16.msra.mxu0 0
  %109 = vmatprep.subr.bf16.mxu0 0
  %110 = vmatpush2.bf16.msra.mxu0 0
  %111 = vmatprep.subr.bf16.mxu0 0
  %112 = vmatpush2.bf16.msra.mxu0 0
  %113 = vmatprep.mubr.bf16.mxu0 0
  %114 = vmatmul.mubr.bf16.gmra.mxu0 %v75
  %v115 = vpop.f32.mrf.mxu0
  %v116 = vadd.f32 %v71, %v115
  %v117 = vpop.f32.mrf.mxu0
  %v118 = vpop.f32.mrf.mxu0
  %v119 = vadd.f32 %v71, %v118
  %v120 = vpop.f32.mrf.mxu0
  %121 = vdwg.mxu0
  %v122 = vmax.f32 %v116, 0.0
  %v123 = vmax.f32 %v119, 0.0
  %v124 = vlaneseq
  %v125 = vand.u32 %v124, 127
  %v126 = vld [vmem:[%s13] sm:$0xff]
  %v127 = vld [vmem:[%s13 + $0x8] sm:$0xff]
  %v128 = vld [vmem:[%s13 + $0x10] sm:$0xff]
  %v129 = vld [vmem:[%s13 + $0x18] sm:$0xff]
  %130 = vset.pattern.permute.xlu0 0
  %131 = vperm.xlu0 %130, %v126
  %v132 = vpop.permute.xlu0 %131
  %133 = vset.pattern.permute.xlu0 0
  %134 = vperm.xlu0 %133, %v127
  %v135 = vpop.permute.xlu0 %134
  %136 = vset.pattern.permute.xlu0 0
  %137 = vperm.xlu0 %136, %v128
  %v138 = vpop.permute.xlu0 %137
  %139 = vset.pattern.permute.xlu0 0
  %140 = vperm.xlu0 %139, %v129
  %v141 = vpop.permute.xlu0 %140
  %vm142 = vcmp.eq.s32.totalorder %v125, %v132
  %vm143 = vcmp.eq.s32.totalorder %v125, %v135
  %vm144 = vcmp.eq.s32.totalorder %v125, %v138
  %vm145 = vcmp.eq.s32.totalorder %v125, %v141
  %v146 = vsel %vm142, 1, 0
  %v147 = vsel %vm143, 1, 0
  %v148 = vsel %vm144, 1, 0
  %v149 = vsel %vm145, 1, 0
  %v150 = vcvt.s32.f32 %v146
  %v151 = vcvt.s32.f32 %v147
  %v152 = vcvt.s32.f32 %v148
  %v153 = vcvt.s32.f32 %v149
  %v154 = vld [vmem:[%s14] sm:$0xff]
  %v155 = vld [vmem:[%s14 + $0x8] sm:$0xff]
  %v156 = vld [vmem:[%s14 + $0x10] sm:$0xff]
  %v157 = vld [vmem:[%s14 + $0x18] sm:$0xff]
  %158 = vset.pattern.permute.xlu0 0
  %159 = vperm.xlu0 %158, %v154
  %v160 = vpop.permute.xlu0 %159
  %161 = vset.pattern.permute.xlu0 0
  %162 = vperm.xlu0 %161, %v155
  %v163 = vpop.permute.xlu0 %162
  %164 = vset.pattern.permute.xlu0 0
  %165 = vperm.xlu0 %164, %v156
  %v166 = vpop.permute.xlu0 %165
  %167 = vset.pattern.permute.xlu0 0
  %168 = vperm.xlu0 %167, %v157
  %v169 = vpop.permute.xlu0 %168
  %vm170 = vcmp.eq.s32.totalorder %v125, %v160
  %vm171 = vcmp.eq.s32.totalorder %v125, %v163
  %vm172 = vcmp.eq.s32.totalorder %v125, %v166
  %vm173 = vcmp.eq.s32.totalorder %v125, %v169
  %v174 = vsel %vm170, 1, 0
  %v175 = vsel %vm171, 1, 0
  %v176 = vsel %vm172, 1, 0
  %v177 = vsel %vm173, 1, 0
  %v178 = vcvt.s32.f32 %v174
  %v179 = vcvt.s32.f32 %v175
  %v180 = vcvt.s32.f32 %v176
  %v181 = vcvt.s32.f32 %v177
  %v182 = vlaneseq
  %v183 = vshrl.u32 %v182, 7
  %v184 = vadd.s32 %v183, 8
  %v185 = vld [vmem:[%s15] sm:$0x1]
  %v186 = vlaneseq
  %v187 = vshrl.u32 %v186, 7
  %v188 = vsub.s32 0, %v187
  %v189 = vrot.slane %v185, %v188
  %vm190 = vcmp.eq.s32.totalorder %v183, %v189
  %vm191 = vcmp.eq.s32.totalorder %v184, %v189
  %v192 = vsel %vm190, 1, 0
  %v193 = vsel %vm191, 1, 0
  %v194 = vcvt.s32.f32 %v192
  %v195 = vcvt.s32.f32 %v193
  %v196 = vld [vmem:[%s3] sm:$0xff]
  %v197 = vld [vmem:[%s3 + $0x8] sm:$0xff]
  %v198 = vld [vmem:[%s3 + $0x10] sm:$0xff]
  %v199 = vld [vmem:[%s3 + $0x18] sm:$0xff]
  %v200 = vpack.c.bf16 %v123, %v122
  %v201 = vpack.c.bf16 %v197, %v196
  %v202 = vpack.c.bf16 %v199, %v198
  %vm203 = vcmask 261120
  %v205 = vsel %vm203, %v200, 0
  %207 = vmatprep.subr.bf16.mxu0 0
  %208 = vmatpush1.bf16.msra.mxu0 0
  %209 = vmatprep.subr.bf16.mxu0 0
  %210 = vmatpush1.bf16.msra.mxu0 0
  %211 = vmatprep.subr.bf16.mxu0 0
  %212 = vmatpush1.bf16.msra.mxu0 0
  %213 = vmatprep.subr.bf16.mxu0 0
  %214 = vmatpush1.bf16.msra.mxu0 0
  %215 = vmatprep.subr.bf16.mxu0 0
  %216 = vmatpush1.bf16.msra.mxu0 0
  %217 = vmatprep.subr.bf16.mxu0 0
  %218 = vmatpush1.bf16.msra.mxu0 0
  %219 = vmatprep.subr.bf16.mxu0 0
  %220 = vmatpush1.bf16.msra.mxu0 %v202
  %221 = vmatprep.subr.bf16.mxu0 0
  %222 = vmatpush1.bf16.msra.mxu0 %v201
  %223 = vmatprep.subr.bf16.mxu0 0
  %224 = vmatpush2.bf16.msra.mxu0 0
  %225 = vmatprep.subr.bf16.mxu0 0
  %226 = vmatpush2.bf16.msra.mxu0 0
  %227 = vmatprep.subr.bf16.mxu0 0
  %228 = vmatpush2.bf16.msra.mxu0 0
  %229 = vmatprep.subr.bf16.mxu0 0
  %230 = vmatpush2.bf16.msra.mxu0 0
  %231 = vmatprep.subr.bf16.mxu0 0
  %232 = vmatpush2.bf16.msra.mxu0 0
  %233 = vmatprep.subr.bf16.mxu0 0
  %234 = vmatpush2.bf16.msra.mxu0 0
  %235 = vmatprep.subr.bf16.mxu0 0
  %236 = vmatpush2.bf16.msra.mxu0 0
  %237 = vmatprep.subr.bf16.mxu0 0
  %238 = vmatpush2.bf16.msra.mxu0 0
  %239 = vmatprep.mubr.bf16.mxu0 0
  %240 = vmatmul.mubr.bf16.gmra.mxu0 %v205
  %v241 = vpop.f32.mrf.mxu0
  %v242 = vadd.f32 0.0, %v241
  %v243 = vpop.f32.mrf.mxu0
  %v244 = vpop.f32.mrf.mxu0
  %v245 = vadd.f32 0.0, %v244
  %v246 = vpop.f32.mrf.mxu0
  %247 = vdwg.mxu0
  %v248 = vld [vmem:[%s4] sm:$0xff]
  %v249 = vld [vmem:[%s4 + $0x8] sm:$0xff]
  %v250 = vld [vmem:[%s4 + $0x10] sm:$0xff]
  %v251 = vld [vmem:[%s4 + $0x18] sm:$0xff]
  %v252 = vpack.c.bf16 %v249, %v248
  %v253 = vpack.c.bf16 %v251, %v250
  %254 = vmatprep.subr.bf16.mxu0 0
  %255 = vmatpush1.bf16.msra.mxu0 0
  %256 = vmatprep.subr.bf16.mxu0 0
  %257 = vmatpush1.bf16.msra.mxu0 0
  %258 = vmatprep.subr.bf16.mxu0 0
  %259 = vmatpush1.bf16.msra.mxu0 0
  %260 = vmatprep.subr.bf16.mxu0 0
  %261 = vmatpush1.bf16.msra.mxu0 0
  %262 = vmatprep.subr.bf16.mxu0 0
  %263 = vmatpush1.bf16.msra.mxu0 0
  %264 = vmatprep.subr.bf16.mxu0 0
  %265 = vmatpush1.bf16.msra.mxu0 0
  %266 = vmatprep.subr.bf16.mxu0 0
  %267 = vmatpush1.bf16.msra.mxu0 %v253
  %268 = vmatprep.subr.bf16.mxu0 0
  %269 = vmatpush1.bf16.msra.mxu0 %v252
  %270 = vmatprep.subr.bf16.mxu0 0
  %271 = vmatpush2.bf16.msra.mxu0 0
  %272 = vmatprep.subr.bf16.mxu0 0
  %273 = vmatpush2.bf16.msra.mxu0 0
  %274 = vmatprep.subr.bf16.mxu0 0
  %275 = vmatpush2.bf16.msra.mxu0 0
  %276 = vmatprep.subr.bf16.mxu0 0
  %277 = vmatpush2.bf16.msra.mxu0 0
  %278 = vmatprep.subr.bf16.mxu0 0
  %279 = vmatpush2.bf16.msra.mxu0 0
  %280 = vmatprep.subr.bf16.mxu0 0
  %281 = vmatpush2.bf16.msra.mxu0 0
  %282 = vmatprep.subr.bf16.mxu0 0
  %283 = vmatpush2.bf16.msra.mxu0 0
  %284 = vmatprep.subr.bf16.mxu0 0
  %285 = vmatpush2.bf16.msra.mxu0 0
  %286 = vmatprep.mubr.bf16.mxu0 0
  %287 = vmatmul.mubr.bf16.gmra.mxu0 %v205
  %v288 = vpop.f32.mrf.mxu0
  %v289 = vadd.f32 0.0, %v288
  %v290 = vpop.f32.mrf.mxu0
  %v291 = vpop.f32.mrf.mxu0
  %v292 = vadd.f32 0.0, %v291
  %v293 = vpop.f32.mrf.mxu0
  %294 = vdwg.mxu0
  %vm295 = vcmask 130048
  %v297 = vsel %vm295, %v178, 0
  %v300 = vsel %vm295, %v179, 0
  %v303 = vsel %vm295, %v180, 0
  %v306 = vsel %vm295, %v181, 0
  %308 = vmatprep.subr.mxu0 0.0
  %309 = vmatpush1.msra.mxu0 0.0
  %310 = vmatprep.subr.mxu0 0.0
  %311 = vmatpush1.msra.mxu0 0.0
  %312 = vmatprep.subr.mxu0 0.0
  %313 = vmatpush1.msra.mxu0 0.0
  %314 = vmatprep.subr.mxu0 0.0
  %315 = vmatpush1.msra.mxu0 0.0
  %316 = vmatprep.subr.mxu0 0.0
  %317 = vmatpush1.msra.mxu0 0.0
  %318 = vmatprep.subr.mxu0 0.0
  %319 = vmatpush1.msra.mxu0 0.0
  %320 = vmatprep.subr.mxu0 0.0
  %321 = vmatpush1.msra.mxu0 0.0
  %322 = vmatprep.subr.mxu0 0.0
  %323 = vmatpush1.msra.mxu0 0.0
  %324 = vmatprep.subr.mxu0 0.0
  %325 = vmatpush1.msra.mxu0 0.0
  %326 = vmatprep.subr.mxu0 0.0
  %327 = vmatpush1.msra.mxu0 0.0
  %328 = vmatprep.subr.mxu0 0.0
  %329 = vmatpush1.msra.mxu0 0.0
  %330 = vmatprep.subr.mxu0 0.0
  %331 = vmatpush1.msra.mxu0 0.0
  %332 = vmatprep.subr.mxu0 0.0
  %333 = vmatpush1.msra.mxu0 0.0
  %334 = vmatprep.subr.mxu0 0.0
  %335 = vmatpush1.msra.mxu0 0.0
  %336 = vmatprep.subr.mxu0 0.0
  %337 = vmatpush1.msra.mxu0 %v292
  %338 = vmatprep.subr.mxu0 0.0
  %339 = vmatpush1.msra.mxu0 %v289
  %340 = vmatprep.subr.mxu0 0.0
  %341 = vmatpush2.msra.mxu0 0.0
  %342 = vmatprep.subr.mxu0 0.0
  %343 = vmatpush2.msra.mxu0 0.0
  %344 = vmatprep.subr.mxu0 0.0
  %345 = vmatpush2.msra.mxu0 0.0
  %346 = vmatprep.subr.mxu0 0.0
  %347 = vmatpush2.msra.mxu0 0.0
  %348 = vmatprep.subr.mxu0 0.0
  %349 = vmatpush2.msra.mxu0 0.0
  %350 = vmatprep.subr.mxu0 0.0
  %351 = vmatpush2.msra.mxu0 0.0
  %352 = vmatprep.subr.mxu0 0.0
  %353 = vmatpush2.msra.mxu0 0.0
  %354 = vmatprep.subr.mxu0 0.0
  %355 = vmatpush2.msra.mxu0 0.0
  %356 = vmatprep.subr.mxu0 0.0
  %357 = vmatpush2.msra.mxu0 0.0
  %358 = vmatprep.subr.mxu0 0.0
  %359 = vmatpush2.msra.mxu0 0.0
  %360 = vmatprep.subr.mxu0 0.0
  %361 = vmatpush2.msra.mxu0 0.0
  %362 = vmatprep.subr.mxu0 0.0
  %363 = vmatpush2.msra.mxu0 0.0
  %364 = vmatprep.subr.mxu0 0.0
  %365 = vmatpush2.msra.mxu0 0.0
  %366 = vmatprep.subr.mxu0 0.0
  %367 = vmatpush2.msra.mxu0 0.0
  %368 = vmatprep.subr.mxu0 0.0
  %369 = vmatpush2.msra.mxu0 0.0
  %370 = vmatprep.subr.mxu0 0.0
  %371 = vmatpush2.msra.mxu0 0.0
  %372 = vmatprep.mubr.f32.mxu0 0.0
  %373 = vmatmul.mubr.f32.gmra.mxu0 %v297
  %v374 = vpop.f32.mrf.mxu0
  %v375 = vadd.f32 0.0, %v374
  %v376 = vpop.f32.mrf.mxu0
  %377 = vmatprep.mubr.f32.mxu0 0.0
  %378 = vmatmul.mubr.f32.gmra.mxu0 %v300
  %v379 = vpop.f32.mrf.mxu0
  %v380 = vadd.f32 0.0, %v379
  %v381 = vpop.f32.mrf.mxu0
  %382 = vmatprep.mubr.f32.mxu0 0.0
  %383 = vmatmul.mubr.f32.gmra.mxu0 %v303
  %v384 = vpop.f32.mrf.mxu0
  %v385 = vadd.f32 0.0, %v384
  %v386 = vpop.f32.mrf.mxu0
  %387 = vmatprep.mubr.f32.mxu0 0.0
  %388 = vmatmul.mubr.f32.gmra.mxu0 %v306
  %v389 = vpop.f32.mrf.mxu0
  %v390 = vadd.f32 0.0, %v389
  %v391 = vpop.f32.mrf.mxu0
  %392 = vdwg.mxu0
  %v394 = vsel %vm295, %v150, 0
  %v397 = vsel %vm295, %v151, 0
  %v400 = vsel %vm295, %v152, 0
  %v403 = vsel %vm295, %v153, 0
  %405 = vmatprep.subr.mxu0 0.0
  %406 = vmatpush1.msra.mxu0 0.0
  %407 = vmatprep.subr.mxu0 0.0
  %408 = vmatpush1.msra.mxu0 0.0
  %409 = vmatprep.subr.mxu0 0.0
  %410 = vmatpush1.msra.mxu0 0.0
  %411 = vmatprep.subr.mxu0 0.0
  %412 = vmatpush1.msra.mxu0 0.0
  %413 = vmatprep.subr.mxu0 0.0
  %414 = vmatpush1.msra.mxu0 0.0
  %415 = vmatprep.subr.mxu0 0.0
  %416 = vmatpush1.msra.mxu0 0.0
  %417 = vmatprep.subr.mxu0 0.0
  %418 = vmatpush1.msra.mxu0 0.0
  %419 = vmatprep.subr.mxu0 0.0
  %420 = vmatpush1.msra.mxu0 0.0
  %421 = vmatprep.subr.mxu0 0.0
  %422 = vmatpush1.msra.mxu0 0.0
  %423 = vmatprep.subr.mxu0 0.0
  %424 = vmatpush1.msra.mxu0 0.0
  %425 = vmatprep.subr.mxu0 0.0
  %426 = vmatpush1.msra.mxu0 0.0
  %427 = vmatprep.subr.mxu0 0.0
  %428 = vmatpush1.msra.mxu0 0.0
  %429 = vmatprep.subr.mxu0 0.0
  %430 = vmatpush1.msra.mxu0 0.0
  %431 = vmatprep.subr.mxu0 0.0
  %432 = vmatpush1.msra.mxu0 0.0
  %433 = vmatprep.subr.mxu0 0.0
  %434 = vmatpush1.msra.mxu0 %v245
  %435 = vmatprep.subr.mxu0 0.0
  %436 = vmatpush1.msra.mxu0 %v242
  %437 = vmatprep.subr.mxu0 0.0
  %438 = vmatpush2.msra.mxu0 0.0
  %439 = vmatprep.subr.mxu0 0.0
  %440 = vmatpush2.msra.mxu0 0.0
  %441 = vmatprep.subr.mxu0 0.0
  %442 = vmatpush2.msra.mxu0 0.0
  %443 = vmatprep.subr.mxu0 0.0
  %444 = vmatpush2.msra.mxu0 0.0
  %445 = vmatprep.subr.mxu0 0.0
  %446 = vmatpush2.msra.mxu0 0.0
  %447 = vmatprep.subr.mxu0 0.0
  %448 = vmatpush2.msra.mxu0 0.0
  %449 = vmatprep.subr.mxu0 0.0
  %450 = vmatpush2.msra.mxu0 0.0
  %451 = vmatprep.subr.mxu0 0.0
  %452 = vmatpush2.msra.mxu0 0.0
  %453 = vmatprep.subr.mxu0 0.0
  %454 = vmatpush2.msra.mxu0 0.0
  %455 = vmatprep.subr.mxu0 0.0
  %456 = vmatpush2.msra.mxu0 0.0
  %457 = vmatprep.subr.mxu0 0.0
  %458 = vmatpush2.msra.mxu0 0.0
  %459 = vmatprep.subr.mxu0 0.0
  %460 = vmatpush2.msra.mxu0 0.0
  %461 = vmatprep.subr.mxu0 0.0
  %462 = vmatpush2.msra.mxu0 0.0
  %463 = vmatprep.subr.mxu0 0.0
  %464 = vmatpush2.msra.mxu0 0.0
  %465 = vmatprep.subr.mxu0 0.0
  %466 = vmatpush2.msra.mxu0 0.0
  %467 = vmatprep.subr.mxu0 0.0
  %468 = vmatpush2.msra.mxu0 0.0
  %469 = vmatprep.mubr.f32.mxu0 0.0
  %470 = vmatmul.mubr.f32.gmra.mxu0 %v394
  %v471 = vpop.f32.mrf.mxu0
  %v472 = vadd.f32 %v375, %v471
  %v473 = vpop.f32.mrf.mxu0
  %474 = vmatprep.mubr.f32.mxu0 0.0
  %475 = vmatmul.mubr.f32.gmra.mxu0 %v397
  %v476 = vpop.f32.mrf.mxu0
  %v477 = vadd.f32 %v380, %v476
  %v478 = vpop.f32.mrf.mxu0
  %479 = vmatprep.mubr.f32.mxu0 0.0
  %480 = vmatmul.mubr.f32.gmra.mxu0 %v400
  %v481 = vpop.f32.mrf.mxu0
  %v482 = vadd.f32 %v385, %v481
  %v483 = vpop.f32.mrf.mxu0
  %484 = vmatprep.mubr.f32.mxu0 0.0
  %485 = vmatmul.mubr.f32.gmra.mxu0 %v403
  %v486 = vpop.f32.mrf.mxu0
  %v487 = vadd.f32 %v390, %v486
  %v488 = vpop.f32.mrf.mxu0
  %489 = vdwg.mxu0
  %v490 = vld [vmem:[%s5] sm:$0x1]
  %v492 = vlaneseq
  %v493 = vshrl.u32 %v492, 7
  %v494 = vsub.s32 0, %v493
  %v495 = vrot.slane %v490, %v494
  %v497 = vadd.f32 %v472, %v495
  %v498 = vadd.f32 %v477, %v495
  %v499 = vadd.f32 %v482, %v495
  %v500 = vadd.f32 %v487, %v495
  %v501 = vmax.f32 %v497, 0.0
  %v502 = vmax.f32 %v498, 0.0
  %v503 = vmax.f32 %v499, 0.0
  %v504 = vmax.f32 %v500, 0.0
  %v505 = vld [vmem:[%s6] sm:$0x1]
  %v507 = vlaneseq
  %v508 = vshrl.u32 %v507, 7
  %v509 = vsub.s32 0, %v508
  %v510 = vrot.slane %v505, %v509
  %v512 = vmul.f32 %v501, %v510
  %v513 = vmul.f32 %v502, %v510
  %v514 = vmul.f32 %v503, %v510
  %v515 = vmul.f32 %v504, %v510
  %v516 = vsel %vm203, %v512, 0.0
  %517 = vadd.xlane.f32.xlu0 %v516
  %v518 = vpop.xlane.xlu0 %517
  %v519 = vsel %vm203, %v513, 0.0
  %520 = vadd.xlane.f32.xlu0 %v519
  %v521 = vpop.xlane.xlu0 %520
  %v522 = vsel %vm203, %v514, 0.0
  %523 = vadd.xlane.f32.xlu0 %v522
  %v524 = vpop.xlane.xlu0 %523
  %v525 = vsel %vm203, %v515, 0.0
  %526 = vadd.xlane.f32.xlu0 %v525
  %v527 = vpop.xlane.xlu0 %526
  %v528 = vld [vmem:[#allocation2] sm:$0x1]
  %v530 = vlaneseq
  %v531 = vshrl.u32 %v530, 7
  %v532 = vsub.s32 0, %v531
  %v533 = vrot.slane %v528, %v532
  %v535 = vadd.f32 %v518, %v533
  %v536 = vadd.f32 %v521, %v533
  %v537 = vadd.f32 %v524, %v533
  %v538 = vadd.f32 %v527, %v533
  %v539 = vxor.u32 %v535, 2147483648
  %v540 = vxor.u32 %v536, 2147483648
  %v541 = vxor.u32 %v537, 2147483648
  %v542 = vxor.u32 %v538, 2147483648
  %v543 = vmul.f32 %v539, 1.442695
  %v544 = vpow.pop %v543
  %v545 = vmul.f32 %v540, 1.442695
  %v546 = vpow.pop %v545
  %v547 = vmul.f32 %v541, 1.442695
  %v548 = vpow.pop %v547
  %v549 = vmul.f32 %v542, 1.442695
  %v550 = vpow.pop %v549
  %v551 = vadd.f32 %v544, 1.0
  %v552 = vadd.f32 %v546, 1.0
  %v553 = vadd.f32 %v548, 1.0
  %v554 = vadd.f32 %v550, 1.0
  %v555 = vrcp.pop %v551
  %v556 = vmul.f32 1.0, %v555
  %v557 = vrcp.pop %v552
  %v558 = vmul.f32 1.0, %v557
  %v559 = vrcp.pop %v553
  %v560 = vmul.f32 1.0, %v559
  %v561 = vrcp.pop %v554
  %v562 = vmul.f32 1.0, %v561
  %v563 = vld [vmem:[%s9] sm:$0xff]
  %v564 = vld [vmem:[%s9 + $0x8] sm:$0xff]
  %v565 = vld [vmem:[%s9 + $0x10] sm:$0xff]
  %v566 = vld [vmem:[%s9 + $0x18] sm:$0xff]
  %v567 = vpack.c.bf16 %v564, %v563
  %v568 = vpack.c.bf16 %v566, %v565
  %569 = vmatprep.subr.bf16.mxu0 0
  %570 = vmatpush1.bf16.msra.mxu0 0
  %571 = vmatprep.subr.bf16.mxu0 0
  %572 = vmatpush1.bf16.msra.mxu0 0
  %573 = vmatprep.subr.bf16.mxu0 0
  %574 = vmatpush1.bf16.msra.mxu0 0
  %575 = vmatprep.subr.bf16.mxu0 0
  %576 = vmatpush1.bf16.msra.mxu0 0
  %577 = vmatprep.subr.bf16.mxu0 0
  %578 = vmatpush1.bf16.msra.mxu0 0
  %579 = vmatprep.subr.bf16.mxu0 0
  %580 = vmatpush1.bf16.msra.mxu0 0
  %581 = vmatprep.subr.bf16.mxu0 0
  %582 = vmatpush1.bf16.msra.mxu0 %v568
  %583 = vmatprep.subr.bf16.mxu0 0
  %584 = vmatpush1.bf16.msra.mxu0 %v567
  %585 = vmatprep.subr.bf16.mxu0 0
  %586 = vmatpush2.bf16.msra.mxu0 0
  %587 = vmatprep.subr.bf16.mxu0 0
  %588 = vmatpush2.bf16.msra.mxu0 0
  %589 = vmatprep.subr.bf16.mxu0 0
  %590 = vmatpush2.bf16.msra.mxu0 0
  %591 = vmatprep.subr.bf16.mxu0 0
  %592 = vmatpush2.bf16.msra.mxu0 0
  %593 = vmatprep.subr.bf16.mxu0 0
  %594 = vmatpush2.bf16.msra.mxu0 0
  %595 = vmatprep.subr.bf16.mxu0 0
  %596 = vmatpush2.bf16.msra.mxu0 0
  %597 = vmatprep.subr.bf16.mxu0 0
  %598 = vmatpush2.bf16.msra.mxu0 0
  %599 = vmatprep.subr.bf16.mxu0 0
  %600 = vmatpush2.bf16.msra.mxu0 0
  %601 = vmatprep.mubr.bf16.mxu0 0
  %602 = vmatmul.mubr.bf16.gmra.mxu0 %v205
  %v603 = vpop.f32.mrf.mxu0
  %v604 = vadd.f32 0.0, %v603
  %v605 = vpop.f32.mrf.mxu0
  %v606 = vpop.f32.mrf.mxu0
  %v607 = vadd.f32 0.0, %v606
  %v608 = vpop.f32.mrf.mxu0
  %609 = vdwg.mxu0
  %610 = vmatprep.subr.mxu0 0.0
  %611 = vmatpush1.msra.mxu0 0.0
  %612 = vmatprep.subr.mxu0 0.0
  %613 = vmatpush1.msra.mxu0 0.0
  %614 = vmatprep.subr.mxu0 0.0
  %615 = vmatpush1.msra.mxu0 0.0
  %616 = vmatprep.subr.mxu0 0.0
  %617 = vmatpush1.msra.mxu0 0.0
  %618 = vmatprep.subr.mxu0 0.0
  %619 = vmatpush1.msra.mxu0 0.0
  %620 = vmatprep.subr.mxu0 0.0
  %621 = vmatpush1.msra.mxu0 0.0
  %622 = vmatprep.subr.mxu0 0.0
  %623 = vmatpush1.msra.mxu0 0.0
  %624 = vmatprep.subr.mxu0 0.0
  %625 = vmatpush1.msra.mxu0 0.0
  %626 = vmatprep.subr.mxu0 0.0
  %627 = vmatpush1.msra.mxu0 0.0
  %628 = vmatprep.subr.mxu0 0.0
  %629 = vmatpush1.msra.mxu0 0.0
  %630 = vmatprep.subr.mxu0 0.0
  %631 = vmatpush1.msra.mxu0 0.0
  %632 = vmatprep.subr.mxu0 0.0
  %633 = vmatpush1.msra.mxu0 0.0
  %634 = vmatprep.subr.mxu0 0.0
  %635 = vmatpush1.msra.mxu0 0.0
  %636 = vmatprep.subr.mxu0 0.0
  %637 = vmatpush1.msra.mxu0 0.0
  %638 = vmatprep.subr.mxu0 0.0
  %639 = vmatpush1.msra.mxu0 %v607
  %640 = vmatprep.subr.mxu0 0.0
  %641 = vmatpush1.msra.mxu0 %v604
  %642 = vmatprep.subr.mxu0 0.0
  %643 = vmatpush2.msra.mxu0 0.0
  %644 = vmatprep.subr.mxu0 0.0
  %645 = vmatpush2.msra.mxu0 0.0
  %646 = vmatprep.subr.mxu0 0.0
  %647 = vmatpush2.msra.mxu0 0.0
  %648 = vmatprep.subr.mxu0 0.0
  %649 = vmatpush2.msra.mxu0 0.0
  %650 = vmatprep.subr.mxu0 0.0
  %651 = vmatpush2.msra.mxu0 0.0
  %652 = vmatprep.subr.mxu0 0.0
  %653 = vmatpush2.msra.mxu0 0.0
  %654 = vmatprep.subr.mxu0 0.0
  %655 = vmatpush2.msra.mxu0 0.0
  %656 = vmatprep.subr.mxu0 0.0
  %657 = vmatpush2.msra.mxu0 0.0
  %658 = vmatprep.subr.mxu0 0.0
  %659 = vmatpush2.msra.mxu0 0.0
  %660 = vmatprep.subr.mxu0 0.0
  %661 = vmatpush2.msra.mxu0 0.0
  %662 = vmatprep.subr.mxu0 0.0
  %663 = vmatpush2.msra.mxu0 0.0
  %664 = vmatprep.subr.mxu0 0.0
  %665 = vmatpush2.msra.mxu0 0.0
  %666 = vmatprep.subr.mxu0 0.0
  %667 = vmatpush2.msra.mxu0 0.0
  %668 = vmatprep.subr.mxu0 0.0
  %669 = vmatpush2.msra.mxu0 0.0
  %670 = vmatprep.subr.mxu0 0.0
  %671 = vmatpush2.msra.mxu0 0.0
  %672 = vmatprep.subr.mxu0 0.0
  %673 = vmatpush2.msra.mxu0 0.0
  %674 = vmatprep.mubr.f32.mxu0 0.0
  %675 = vmatmul.mubr.f32.gmra.mxu0 %v394
  %v676 = vpop.f32.mrf.mxu0
  %v677 = vadd.f32 0.0, %v676
  %v678 = vpop.f32.mrf.mxu0
  %679 = vmatprep.mubr.f32.mxu0 0.0
  %680 = vmatmul.mubr.f32.gmra.mxu0 %v397
  %v681 = vpop.f32.mrf.mxu0
  %v682 = vadd.f32 0.0, %v681
  %v683 = vpop.f32.mrf.mxu0
  %684 = vmatprep.mubr.f32.mxu0 0.0
  %685 = vmatmul.mubr.f32.gmra.mxu0 %v400
  %v686 = vpop.f32.mrf.mxu0
  %v687 = vadd.f32 0.0, %v686
  %v688 = vpop.f32.mrf.mxu0
  %689 = vmatprep.mubr.f32.mxu0 0.0
  %690 = vmatmul.mubr.f32.gmra.mxu0 %v403
  %v691 = vpop.f32.mrf.mxu0
  %v692 = vadd.f32 0.0, %v691
  %v693 = vpop.f32.mrf.mxu0
  %694 = vdwg.mxu0
  %696 = vset.pattern.permute.xlu0 0
  %697 = vperm.xlu0 %696, %v556
  %v698 = vpop.permute.xlu0 %697
  %701 = vset.pattern.permute.xlu0 0
  %702 = vperm.xlu0 %701, %v558
  %v703 = vpop.permute.xlu0 %702
  %706 = vset.pattern.permute.xlu0 0
  %707 = vperm.xlu0 %706, %v560
  %v708 = vpop.permute.xlu0 %707
  %711 = vset.pattern.permute.xlu0 0
  %712 = vperm.xlu0 %711, %v562
  %v713 = vpop.permute.xlu0 %712
  %v715 = vmul.f32 %v677, %v698
  %v716 = vmul.f32 %v682, %v703
  %v717 = vmul.f32 %v687, %v708
  %v718 = vmul.f32 %v692, %v713
  %v720 = vsel %vm203, %v194, 0
  %v723 = vsel %vm203, %v195, 0
  %725 = vmatprep.subr.mxu0 0.0
  %726 = vmatpush1.msra.mxu0 0.0
  %727 = vmatprep.subr.mxu0 0.0
  %728 = vmatpush1.msra.mxu0 0.0
  %729 = vmatprep.subr.mxu0 0.0
  %730 = vmatpush1.msra.mxu0 0.0
  %731 = vmatprep.subr.mxu0 0.0
  %732 = vmatpush1.msra.mxu0 0.0
  %733 = vmatprep.subr.mxu0 0.0
  %734 = vmatpush1.msra.mxu0 0.0
  %735 = vmatprep.subr.mxu0 0.0
  %736 = vmatpush1.msra.mxu0 0.0
  %737 = vmatprep.subr.mxu0 0.0
  %738 = vmatpush1.msra.mxu0 0.0
  %739 = vmatprep.subr.mxu0 0.0
  %740 = vmatpush1.msra.mxu0 0.0
  %741 = vmatprep.subr.mxu0 0.0
  %742 = vmatpush1.msra.mxu0 0.0
  %743 = vmatprep.subr.mxu0 0.0
  %744 = vmatpush1.msra.mxu0 0.0
  %745 = vmatprep.subr.mxu0 0.0
  %746 = vmatpush1.msra.mxu0 0.0
  %747 = vmatprep.subr.mxu0 0.0
  %748 = vmatpush1.msra.mxu0 0.0
  %749 = vmatprep.subr.mxu0 0.0
  %750 = vmatpush1.msra.mxu0 %v718
  %751 = vmatprep.subr.mxu0 0.0
  %752 = vmatpush1.msra.mxu0 %v717
  %753 = vmatprep.subr.mxu0 0.0
  %754 = vmatpush1.msra.mxu0 %v716
  %755 = vmatprep.subr.mxu0 0.0
  %756 = vmatpush1.msra.mxu0 %v715
  %757 = vmatprep.subr.mxu0 0.0
  %758 = vmatpush2.msra.mxu0 0.0
  %759 = vmatprep.subr.mxu0 0.0
  %760 = vmatpush2.msra.mxu0 0.0
  %761 = vmatprep.subr.mxu0 0.0
  %762 = vmatpush2.msra.mxu0 0.0
  %763 = vmatprep.subr.mxu0 0.0
  %764 = vmatpush2.msra.mxu0 0.0
  %765 = vmatprep.subr.mxu0 0.0
  %766 = vmatpush2.msra.mxu0 0.0
  %767 = vmatprep.subr.mxu0 0.0
  %768 = vmatpush2.msra.mxu0 0.0
  %769 = vmatprep.subr.mxu0 0.0
  %770 = vmatpush2.msra.mxu0 0.0
  %771 = vmatprep.subr.mxu0 0.0
  %772 = vmatpush2.msra.mxu0 0.0
  %773 = vmatprep.subr.mxu0 0.0
  %774 = vmatpush2.msra.mxu0 0.0
  %775 = vmatprep.subr.mxu0 0.0
  %776 = vmatpush2.msra.mxu0 0.0
  %777 = vmatprep.subr.mxu0 0.0
  %778 = vmatpush2.msra.mxu0 0.0
  %779 = vmatprep.subr.mxu0 0.0
  %780 = vmatpush2.msra.mxu0 0.0
  %781 = vmatprep.subr.mxu0 0.0
  %782 = vmatpush2.msra.mxu0 0.0
  %783 = vmatprep.subr.mxu0 0.0
  %784 = vmatpush2.msra.mxu0 0.0
  %785 = vmatprep.subr.mxu0 0.0
  %786 = vmatpush2.msra.mxu0 0.0
  %787 = vmatprep.subr.mxu0 0.0
  %788 = vmatpush2.msra.mxu0 0.0
  %789 = vmatprep.mubr.f32.mxu0 0.0
  %790 = vmatmul.mubr.f32.gmra.mxu0 %v720
  %v791 = vpop.f32.mrf.mxu0
  %v792 = vadd.f32 0.0, %v791
  %v793 = vpop.f32.mrf.mxu0
  %794 = vmatprep.mubr.f32.mxu0 0.0
  %795 = vmatmul.mubr.f32.gmra.mxu0 %v723
  %v796 = vpop.f32.mrf.mxu0
  %v797 = vadd.f32 0.0, %v796
  %v798 = vpop.f32.mrf.mxu0
  %799 = vdwg.mxu0
  %v800 = vld [vmem:[%s8] sm:$0xff]
  %v801 = vld [vmem:[%s8 + $0x8] sm:$0xff]
  %v802 = vld [vmem:[%s8 + $0x10] sm:$0xff]
  %v803 = vld [vmem:[%s8 + $0x18] sm:$0xff]
  %v804 = vpack.c.bf16 %v801, %v800
  %v805 = vpack.c.bf16 %v803, %v802
  %806 = vmatprep.subr.bf16.mxu0 0
  %807 = vmatpush1.bf16.msra.mxu0 0
  %808 = vmatprep.subr.bf16.mxu0 0
  %809 = vmatpush1.bf16.msra.mxu0 0
  %810 = vmatprep.subr.bf16.mxu0 0
  %811 = vmatpush1.bf16.msra.mxu0 0
  %812 = vmatprep.subr.bf16.mxu0 0
  %813 = vmatpush1.bf16.msra.mxu0 0
  %814 = vmatprep.subr.bf16.mxu0 0
  %815 = vmatpush1.bf16.msra.mxu0 0
  %816 = vmatprep.subr.bf16.mxu0 0
  %817 = vmatpush1.bf16.msra.mxu0 0
  %818 = vmatprep.subr.bf16.mxu0 0
  %819 = vmatpush1.bf16.msra.mxu0 %v805
  %820 = vmatprep.subr.bf16.mxu0 0
  %821 = vmatpush1.bf16.msra.mxu0 %v804
  %822 = vmatprep.subr.bf16.mxu0 0
  %823 = vmatpush2.bf16.msra.mxu0 0
  %824 = vmatprep.subr.bf16.mxu0 0
  %825 = vmatpush2.bf16.msra.mxu0 0
  %826 = vmatprep.subr.bf16.mxu0 0
  %827 = vmatpush2.bf16.msra.mxu0 0
  %828 = vmatprep.subr.bf16.mxu0 0
  %829 = vmatpush2.bf16.msra.mxu0 0
  %830 = vmatprep.subr.bf16.mxu0 0
  %831 = vmatpush2.bf16.msra.mxu0 0
  %832 = vmatprep.subr.bf16.mxu0 0
  %833 = vmatpush2.bf16.msra.mxu0 0
  %834 = vmatprep.subr.bf16.mxu0 0
  %835 = vmatpush2.bf16.msra.mxu0 0
  %836 = vmatprep.subr.bf16.mxu0 0
  %837 = vmatpush2.bf16.msra.mxu0 0
  %838 = vmatprep.mubr.bf16.mxu0 0
  %839 = vmatmul.mubr.bf16.gmra.mxu0 %v205
  %v840 = vpop.f32.mrf.mxu0
  %v841 = vadd.f32 %v792, %v840
  %v842 = vpop.f32.mrf.mxu0
  %v843 = vpop.f32.mrf.mxu0
  %v844 = vadd.f32 %v797, %v843
  %v845 = vpop.f32.mrf.mxu0
  %846 = vdwg.mxu0
  %v847 = vld [vmem:[%s10] sm:$0x1]
  %v849 = vlaneseq
  %v850 = vshrl.u32 %v849, 7
  %v851 = vsub.s32 0, %v850
  %v852 = vrot.slane %v847, %v851
  %v854 = vadd.f32 %v841, %v852
  %v855 = vadd.f32 %v844, %v852
  %v856 = vmax.f32 %v854, 0.0
  %v857 = vmax.f32 %v855, 0.0
  %v858 = vld [vmem:[%s16] sm:$0x1]
  %v859 = vlaneseq
  %v860 = vshrl.u32 %v859, 7
  %v861 = vsub.s32 0, %v860
  %v862 = vrot.slane %v858, %v861
  %vm863 = vcmp.eq.s32.totalorder %v183, %v862
  %v864 = vsel %vm863, 1, 0
  %v865 = vcvt.s32.f32 %v864
  %vm866 = vcmask 123904
  %v867 = vsel %vm866, %v865, 0.0
  %868 = vadd.xlane.f32.xlu0 %v867
  %v869 = vpop.xlane.xlu0 %868
  %v870 = vmax.f32 %v869, 1.0
  %v871 = vrcp.pop %v870
  %v872 = vmul.f32 %v865, %v871
  %v874 = vsel %vm295, %v872, 0
  %876 = vmatprep.subr.mxu0 0.0
  %877 = vmatpush1.msra.mxu0 0.0
  %878 = vmatprep.subr.mxu0 0.0
  %879 = vmatpush1.msra.mxu0 0.0
  %880 = vmatprep.subr.mxu0 0.0
  %881 = vmatpush1.msra.mxu0 0.0
  %882 = vmatprep.subr.mxu0 0.0
  %883 = vmatpush1.msra.mxu0 0.0
  %884 = vmatprep.subr.mxu0 0.0
  %885 = vmatpush1.msra.mxu0 0.0
  %886 = vmatprep.subr.mxu0 0.0
  %887 = vmatpush1.msra.mxu0 0.0
  %888 = vmatprep.subr.mxu0 0.0
  %889 = vmatpush1.msra.mxu0 0.0
  %890 = vmatprep.subr.mxu0 0.0
  %891 = vmatpush1.msra.mxu0 0.0
  %892 = vmatprep.subr.mxu0 0.0
  %893 = vmatpush1.msra.mxu0 0.0
  %894 = vmatprep.subr.mxu0 0.0
  %895 = vmatpush1.msra.mxu0 0.0
  %896 = vmatprep.subr.mxu0 0.0
  %897 = vmatpush1.msra.mxu0 0.0
  %898 = vmatprep.subr.mxu0 0.0
  %899 = vmatpush1.msra.mxu0 0.0
  %900 = vmatprep.subr.mxu0 0.0
  %901 = vmatpush1.msra.mxu0 0.0
  %902 = vmatprep.subr.mxu0 0.0
  %903 = vmatpush1.msra.mxu0 0.0
  %904 = vmatprep.subr.mxu0 0.0
  %905 = vmatpush1.msra.mxu0 %v857
  %906 = vmatprep.subr.mxu0 0.0
  %907 = vmatpush1.msra.mxu0 %v856
  %908 = vmatprep.subr.mxu0 0.0
  %909 = vmatpush2.msra.mxu0 0.0
  %910 = vmatprep.subr.mxu0 0.0
  %911 = vmatpush2.msra.mxu0 0.0
  %912 = vmatprep.subr.mxu0 0.0
  %913 = vmatpush2.msra.mxu0 0.0
  %914 = vmatprep.subr.mxu0 0.0
  %915 = vmatpush2.msra.mxu0 0.0
  %916 = vmatprep.subr.mxu0 0.0
  %917 = vmatpush2.msra.mxu0 0.0
  %918 = vmatprep.subr.mxu0 0.0
  %919 = vmatpush2.msra.mxu0 0.0
  %920 = vmatprep.subr.mxu0 0.0
  %921 = vmatpush2.msra.mxu0 0.0
  %922 = vmatprep.subr.mxu0 0.0
  %923 = vmatpush2.msra.mxu0 0.0
  %924 = vmatprep.subr.mxu0 0.0
  %925 = vmatpush2.msra.mxu0 0.0
  %926 = vmatprep.subr.mxu0 0.0
  %927 = vmatpush2.msra.mxu0 0.0
  %928 = vmatprep.subr.mxu0 0.0
  %929 = vmatpush2.msra.mxu0 0.0
  %930 = vmatprep.subr.mxu0 0.0
  %931 = vmatpush2.msra.mxu0 0.0
  %932 = vmatprep.subr.mxu0 0.0
  %933 = vmatpush2.msra.mxu0 0.0
  %934 = vmatprep.subr.mxu0 0.0
  %935 = vmatpush2.msra.mxu0 0.0
  %936 = vmatprep.subr.mxu0 0.0
  %937 = vmatpush2.msra.mxu0 0.0
  %938 = vmatprep.subr.mxu0 0.0
  %939 = vmatpush2.msra.mxu0 0.0
  %940 = vmatprep.mubr.f32.mxu0 0.0
  %941 = vmatmul.mubr.f32.gmra.mxu0 %v874
  %v942 = vpop.f32.mrf.mxu0
  %v943 = vadd.f32 0.0, %v942
  %v944 = vpop.f32.mrf.mxu0
  %945 = vdwg.mxu0
  %vm946 = vcmask 254976
  %947 = vst.msk [vmem:[%s17] sm:$0x3] %vm946, %v943
  %v948 = vld [vmem:[%s11] sm:$0xff]
  %v949 = vld [vmem:[%s11 + $0x8] sm:$0xff]
  %v950 = vld [vmem:[%s11 + $0x10] sm:$0xff]
  %v951 = vld [vmem:[%s11 + $0x18] sm:$0xff]
  %v952 = vpack.c.bf16 %v943, %v943
  %v953 = vpack.c.bf16 %v949, %v948
  %v954 = vpack.c.bf16 %v951, %v950
  %v955 = vld [vmem:[%s12] sm:$0x1]
  %v957 = vlaneseq
  %v958 = vshrl.u32 %v957, 7
  %v959 = vsub.s32 0, %v958
  %v960 = vrot.slane %v955, %v959
  %v963 = vsel %vm203, %v952, 0
  %965 = vmatprep.subr.bf16.mxu0 0
  %966 = vmatpush1.bf16.msra.mxu0 0
  %967 = vmatprep.subr.bf16.mxu0 0
  %968 = vmatpush1.bf16.msra.mxu0 0
  %969 = vmatprep.subr.bf16.mxu0 0
  %970 = vmatpush1.bf16.msra.mxu0 0
  %971 = vmatprep.subr.bf16.mxu0 0
  %972 = vmatpush1.bf16.msra.mxu0 0
  %973 = vmatprep.subr.bf16.mxu0 0
  %974 = vmatpush1.bf16.msra.mxu0 0
  %975 = vmatprep.subr.bf16.mxu0 0
  %976 = vmatpush1.bf16.msra.mxu0 0
  %977 = vmatprep.subr.bf16.mxu0 0
  %978 = vmatpush1.bf16.msra.mxu0 %v954
  %979 = vmatprep.subr.bf16.mxu0 0
  %980 = vmatpush1.bf16.msra.mxu0 %v953
  %981 = vmatprep.subr.bf16.mxu0 0
  %982 = vmatpush2.bf16.msra.mxu0 0
  %983 = vmatprep.subr.bf16.mxu0 0
  %984 = vmatpush2.bf16.msra.mxu0 0
  %985 = vmatprep.subr.bf16.mxu0 0
  %986 = vmatpush2.bf16.msra.mxu0 0
  %987 = vmatprep.subr.bf16.mxu0 0
  %988 = vmatpush2.bf16.msra.mxu0 0
  %989 = vmatprep.subr.bf16.mxu0 0
  %990 = vmatpush2.bf16.msra.mxu0 0
  %991 = vmatprep.subr.bf16.mxu0 0
  %992 = vmatpush2.bf16.msra.mxu0 0
  %993 = vmatprep.subr.bf16.mxu0 0
  %994 = vmatpush2.bf16.msra.mxu0 0
  %995 = vmatprep.subr.bf16.mxu0 0
  %996 = vmatpush2.bf16.msra.mxu0 0
  %997 = vmatprep.mubr.bf16.mxu0 0
  %998 = vmatmul.mubr.bf16.gmra.mxu0 %v963
  %v999 = vpop.f32.mrf.mxu0
  %v1000 = vadd.f32 %v960, %v999
  %v1001 = vpop.f32.mrf.mxu0
  %v1002 = vpop.f32.mrf.mxu0
  %v1003 = vpop.f32.mrf.mxu0
  %1004 = vdwg.mxu0
  %vm1005 = vcmask 58368
  %1006 = vst.msk [vmem:[%s18] sm:$0x3] %vm1005, %v1000
  // Predicated region
  $region70: #{mbase_forward.1} parent=0 // pred_check
    _
  $region71: #{mbase_forward.1} parent=0 // pred_check_branch
    %1008 = sbr.rel (0) target = $region73
  $region72: #{mbase_forward.1} parent=0 // pred_region
    _
  $region73: #{mbase_forward.1} parent=0 // pred_fallthru
    _
  // Predicated region
  $region74: #{mbase_forward.1} parent=0 // pred_check
    _
  $region75: #{mbase_forward.1} parent=0 // pred_check_branch
    %1010 = sbr.rel (0) target = $region77
  $region76: #{mbase_forward.1} parent=0 // pred_region
    _
  $region77: #{mbase_forward.1} parent=0 // pred_fallthru
    _
  // Predicated region
  $region78: #{mbase_forward.1} parent=0 // pred_check
    _
  $region79: #{mbase_forward.1} parent=0 // pred_check_branch
    %1012 = sbr.rel (0) target = $region81
  $region80: #{mbase_forward.1} parent=0 // pred_region
    _
  $region81: #{mbase_forward.1} parent=0 // pred_fallthru
    _
  // Predicated region
  $region82: #{mbase_forward.1} parent=0 // pred_check
    _
  $region83: #{mbase_forward.1} parent=0 // pred_check_branch
    %1014 = sbr.rel (0) target = $region85
  $region84: #{mbase_forward.1} parent=0 // pred_region
    _
  $region85: #{mbase_forward.1} parent=0 // pred_fallthru
    _

</llo_original>
